<compile_context>
chip_gen: v5e
topology: v5e:2x2
jax: 0.10.0
libtpu: 0.0.40
codegen_flags: <defaults>
</compile_context>

<pallas_src>
import functools
import math

import numpy as np

import jax
import jax.numpy as jnp
from jax.experimental import pallas as pl
from jax.experimental.pallas import tpu as pltpu


# ----------------------------------------------------------------------------
# Pallas kernel: one row tile of the weighted multi-bandwidth kernel sum
# ----------------------------------------------------------------------------
def _ncmmd_kernel(xr_ref, xt_ref, rsq_ref, csq_ref, lfac_ref, rfac_ref,
                  out_ref, *, kernel_mul, kernel_num):
    """All bandwidth scales are pre-folded on the host, so

        arg = rsq_s + csq_s + <x_r, xT_s> = -||x_r - x_c||^2 / b_last

    xr_ref   : (TM, Dp)  features, row tile (streamed, unscaled)
    xt_ref   : (Dp, Np)  features^T pre-scaled by 2/b_last (resident)
    rsq_ref  : (TM, 1)   -||x_r||^2 / b_last (streamed)
    csq_ref  : (1,  Np)  -||x_c||^2 / b_last (resident)
    lfac_ref : (TM, Fp)  row weight factors, rank-2C (streamed)
    rfac_ref : (Fp, Np)  column weight factors^T (resident)
    out_ref  : (TM, 1)   per-row partial sums of  W * K
    """
    # + 2<x_r, x_c>/b_last — MXU, standard contraction, no in-kernel transpose.
    cross = jnp.dot(xr_ref[...], xt_ref[...],
                    preferred_element_type=jnp.float32)          # [TM, Np]
    arg = rsq_ref[...] + csq_ref[...] + cross                    # = -L2/b_last

    # Multi-bandwidth Gaussian sum.  For kernel_mul == 2: one EUP exp + VPU
    # squaring chain (exp(-L2/b_k) = E^(2^(K-1-k))); otherwise generic exps.
    e = jnp.exp(arg)
    if kernel_mul == 2.0:
        ksum = e
        t = e
        for _ in range(kernel_num - 1):
            t = t * t
            ksum = ksum + t
    else:
        ksum = e
        for k in range(kernel_num - 1):
            ksum = ksum + jnp.exp(arg * (kernel_mul ** (k + 1)))

    # Reconstruct the [TM, Np] class-conditional weight tile from its rank-2C
    # factors (tiny MXU matmul) instead of streaming an N x N weight matrix.
    w_tile = jnp.dot(lfac_ref[...], rfac_ref[...],
                     preferred_element_type=jnp.float32)         # [TM, Np]

    # Per-row partials; the final scalar reduction happens outside the kernel,
    # keeping the row-tile grid axis fully parallel (v7x megacore).
    out_ref[...] = jnp.sum(w_tile * ksum, axis=1, keepdims=True)


# ----------------------------------------------------------------------------
# Small helpers
# ----------------------------------------------------------------------------
def _round_up(x, m):
    return ((x + m - 1) // m) * m


def _pick_row_tile(n_pad, d_pad, f_pad, vmem_budget_bytes=24 * 1024 * 1024):
    """Largest row tile (multiple of 8, divisor of n_pad) within a VMEM budget.

    Allows a single grid step when everything fits (no forced tiny tiles)."""
    resident = 2 * 4 * (d_pad * n_pad + n_pad + f_pad * n_pad)   # xT, csq, R^T

    def fits(t):
        streamed = 2 * 4 * (t * d_pad + t + t * f_pad + t)       # double-buffered
        temps = 4 * 4 * t * n_pad                                # cross/arg/ksum/w
        return resident + streamed + temps <= vmem_budget_bytes

    if n_pad <= 1024 and fits(n_pad):
        return n_pad                                             # single grid step
    for t in (512, 256, 128):
        if n_pad % t == 0 and fits(t):
            return t
    # TODO(synk): for very large N the resident [Dp, Np] / [Fp, Np] blocks
    # themselves exceed VMEM (esp. v5e's 16 MiB default / v7x's 64 MiB); a
    # 2-D grid with a column-tile axis would be needed there.
    for t in (128, 64, 32, 16, 8):
        if n_pad % t == 0:
            return t
    return 8


def _cal_weight_factors(label_src, logits_tgt, num_class):
    """JAX equivalent of NCMMDLoss.cal_weight, returned as rank-C factors.

    With the returned (s_vec, t_vec, s_m, t_m):
        W_ss = s_m @ s_vec.T,  W_tt = t_m @ t_vec.T,  W_st = s_m @ t_vec.T
    (each already divided by the number of classes present in both domains).
    """
    label_src = jnp.asarray(label_src, jnp.int32)
    logits_tgt = jnp.asarray(logits_tgt, jnp.float32)

    onehot = jax.nn.one_hot(label_src, num_class, dtype=jnp.float32)   # [bs, C]
    s_sum = jnp.sum(onehot, axis=0, keepdims=True)
    s_vec = onehot / jnp.where(s_sum == 0.0, 1.0, s_sum)

    tgt_label = jnp.argmax(logits_tgt, axis=1)
    t_onehot = jax.nn.one_hot(tgt_label, num_class, dtype=jnp.float32)
    t_sum = jnp.sum(logits_tgt, axis=0, keepdims=True)
    t_vec = logits_tgt / jnp.where(t_sum == 0.0, 1.0, t_sum)

    present_s = jnp.sum(onehot, axis=0) > 0.0
    present_t = jnp.sum(t_onehot, axis=0) > 0.0
    valid = jnp.logical_and(present_s, present_t).astype(jnp.float32)  # [C]
    count = jnp.sum(valid)
    scale = jnp.where(count > 0.0, 1.0 / jnp.maximum(count, 1.0), 0.0)

    s_m = s_vec * (valid * scale)[None, :]
    t_m = t_vec * (valid * scale)[None, :]
    return s_vec, t_vec, s_m, t_m


# ----------------------------------------------------------------------------
# Functional forward
# ----------------------------------------------------------------------------
def ncmmd_loss(feat_src, feat_tgt, label_src, logits_tgt, *, num_class,
               kernel_mul=2.0, kernel_num=5, fix_sigma=None,
               gamma=1.0, curr_iter=0, max_iter=1000,
               matmul_dtype=jnp.float32):
    # matmul_dtype=jnp.bfloat16 halves the resident feature VMEM and runs the
    # MXU at full rate, but perturbs the loss at ~1e-3 relative (review-flagged
    # tolerance concern), so the default stays f32.
    feat_src = jnp.asarray(feat_src, jnp.float32)
    feat_tgt = jnp.asarray(feat_tgt, jnp.float32)

    bs = feat_src.shape[0]
    n_total = bs + feat_tgt.shape[0]
    d = feat_src.shape[1]
    total = jnp.concatenate([feat_src, feat_tgt], axis=0)               # [N, D]

    # --- class-conditional weight factors (cal_weight) -----------------------
    s_vec, t_vec, s_m, t_m = _cal_weight_factors(label_src, logits_tgt, num_class)

    # --- bandwidth: centered closed form (cancellation-free), O(N*D) ---------
    if fix_sigma:
        bandwidth = jnp.float32(fix_sigma)
    else:
        centered = total - jnp.mean(total, axis=0, keepdims=True)
        # sum_{i,j} ||x_i - x_j||^2 == 2 * N * sum_i ||x_i - mean||^2  (exact)
        sum_l2 = 2.0 * n_total * jnp.sum(centered * centered)
        bandwidth = sum_l2 / jnp.float32(n_total * n_total - n_total)
    bandwidth = bandwidth / jnp.float32(kernel_mul ** (kernel_num // 2))
    b_last = bandwidth * jnp.float32(kernel_mul ** (kernel_num - 1))
    neg_inv_blast = -1.0 / b_last                                        # traced

    # --- padding: lanes (cols) and contraction dim to 128 multiples ----------
    lane = 128
    n_pad = _round_up(max(n_total, lane), lane)
    d_pad = _round_up(max(d, lane), lane)
    fdim = 2 * num_class
    f_pad = _round_up(max(fdim, 8), 8)

    tm = _pick_row_tile(n_pad, d_pad, f_pad)
    grid = (n_pad // tm,)

    total_p = jnp.zeros((n_pad, d_pad), jnp.float32).at[:n_total, :d].set(total)
    sqn = jnp.sum(total_p * total_p, axis=1)                             # [Np]
    rsq_s = (sqn * neg_inv_blast).reshape(n_pad, 1)
    csq_s = (sqn * neg_inv_blast).reshape(1, n_pad)

    # Feature operands: unscaled rows (streamed) + pre-transposed resident xT
    # pre-scaled by 2/b_last, so the in-kernel dot needs no transpose and no
    # per-element bandwidth multiply.
    x_rows = total_p.astype(matmul_dtype)
    xt_scaled = (total_p.T * (-2.0 * neg_inv_blast)).astype(matmul_dtype)

    # Rank-2C weight factors: W = L @ R^T with
    #   L[:bs, :C]      = s_m        L[bs:N, C:2C]   = t_m
    #   R^T[:C, :bs]    = s_vec^T    R^T[:C, bs:N]   = -2 * t_vec^T
    #   R^T[C:2C, bs:N] = t_vec^T    (everything else, incl. padding, is 0)
    C = num_class
    lfac = jnp.zeros((n_pad, f_pad), jnp.float32)
    lfac = lfac.at[:bs, :C].set(s_m)
    lfac = lfac.at[bs:n_total, C:2 * C].set(t_m)
    rfac = jnp.zeros((f_pad, n_pad), jnp.float32)
    rfac = rfac.at[:C, :bs].set(s_vec.T)
    rfac = rfac.at[:C, bs:n_total].set(-2.0 * t_vec.T)
    rfac = rfac.at[C:2 * C, bs:n_total].set(t_vec.T)

    kernel = functools.partial(_ncmmd_kernel,
                               kernel_mul=float(kernel_mul),
                               kernel_num=int(kernel_num))

    # VMEM budget: raise the scoped limit only when needed, cap at 48 MiB so a
    # config that fits v5e/v6e also leaves headroom on v7x's 64 MiB.
    bpe = jnp.dtype(matmul_dtype).itemsize
    resident_b = 2 * (d_pad * n_pad * bpe + n_pad * 4 + f_pad * n_pad * 4)
    streamed_b = 2 * (tm * d_pad * bpe + tm * 4 + tm * f_pad * 4 + tm * 4)
    temp_b = 4 * 4 * tm * n_pad
    vmem_limit = int(min(48 * 1024 * 1024,
                         max(32 * 1024 * 1024,
                             2 * (resident_b + streamed_b + temp_b))))
    # TODO(synk): constant-index resident blocks could use
    # pipeline_mode=pl.Buffered(1) to drop their second buffer on v7x.

    partials = pl.pallas_call(
        kernel,
        out_shape=jax.ShapeDtypeStruct((n_pad, 1), jnp.float32),
        grid_spec=pltpu.PrefetchScalarGridSpec(
            num_scalar_prefetch=0,
            grid=grid,
            in_specs=[
                pl.BlockSpec((tm, d_pad), lambda i: (i, 0)),      # x row tile
                pl.BlockSpec((d_pad, n_pad), lambda i: (0, 0)),   # xT (resident)
                pl.BlockSpec((tm, 1), lambda i: (i, 0)),          # -||x_r||^2/b
                pl.BlockSpec((1, n_pad), lambda i: (0, 0)),       # -||x_c||^2/b
                pl.BlockSpec((tm, f_pad), lambda i: (i, 0)),      # L row factors
                pl.BlockSpec((f_pad, n_pad), lambda i: (0, 0)),   # R^T (resident)
            ],
            out_specs=pl.BlockSpec((tm, 1), lambda i: (i, 0)),    # row partials
        ),
        compiler_params=pltpu.CompilerParams(
            dimension_semantics=("parallel",),
            vmem_limit_bytes=vmem_limit),
    )(x_rows, xt_scaled, rsq_s, csq_s, lfac, rfac)

    loss = jnp.sum(partials)
    # Original returns 0 if any NaN appears in the kernel matrix; NaN*(zero
    # weight)=NaN still propagates through the weighted sum, so one isnan
    # check on the reduced loss is equivalent.
    loss = jnp.where(jnp.isnan(loss), jnp.float32(0.0), loss)

    lamb = 2.0 / (1.0 + math.exp(-gamma * curr_iter / max_iter)) - 1.0
    return loss * jnp.float32(lamb)


# ----------------------------------------------------------------------------
# Module-like wrapper (keeps curr_iter Python state, as in the nn.Module)
# ----------------------------------------------------------------------------
class NCMMDLoss:
    def __init__(self, num_class, kernel_mul=2.0, kernel_num=5, fix_sigma=None,
                 gamma=1.0, max_iter=1000, matmul_dtype=jnp.float32, **kwargs):
        self.num_class = num_class
        self.kernel_mul = kernel_mul
        self.kernel_num = kernel_num
        self.fix_sigma = fix_sigma
        self.gamma = gamma
        self.max_iter = max_iter
        self.matmul_dtype = matmul_dtype
        self.curr_iter = 0

    def __call__(self, feat_src, feat_tgt, label_src, logits_tgt):
        loss = ncmmd_loss(feat_src, feat_tgt, label_src, logits_tgt,
                          num_class=self.num_class,
                          kernel_mul=self.kernel_mul,
                          kernel_num=self.kernel_num,
                          fix_sigma=self.fix_sigma,
                          gamma=self.gamma,
                          curr_iter=self.curr_iter,
                          max_iter=self.max_iter,
                          matmul_dtype=self.matmul_dtype)
        # TODO(synk): torch skips this increment when it early-returns on NaN;
        # that data-dependent Python state change has no traced equivalent.
        self.curr_iter = min(self.curr_iter + 1, self.max_iter)
        return loss


# ----------------------------------------------------------------------------
# Pure-numpy reference mirroring the PyTorch module (for the sanity check)
# ----------------------------------------------------------------------------
def _reference_ncmmd(feat_src, feat_tgt, label_src, logits_tgt, *, num_class,
                     kernel_mul=2.0, kernel_num=5, fix_sigma=None,
                     gamma=1.0, curr_iter=0, max_iter=1000):
    feat_src = np.asarray(feat_src, np.float64)
    feat_tgt = np.asarray(feat_tgt, np.float64)
    label_src = np.asarray(label_src)
    logits = np.asarray(logits_tgt, np.float64)
    bs = feat_src.shape[0]

    # cal_weight
    onehot = np.eye(num_class)[label_src]
    ssum = onehot.sum(axis=0, keepdims=True); ssum[ssum == 0] = 1.0
    onehot = onehot / ssum
    tgt_label = logits.argmax(axis=1)
    tsum = logits.sum(axis=0, keepdims=True); tsum[tsum == 0] = 1.0
    logits_n = logits / tsum
    w_ss = np.zeros((bs, bs)); w_tt = np.zeros((bs, bs)); w_st = np.zeros((bs, bs))
    set_s, set_t = set(label_src.tolist()), set(tgt_label.tolist())
    count = 0
    for i in range(num_class):
        if i in set_s and i in set_t:
            s = onehot[:, i].reshape(bs, 1)
            t = logits_n[:, i].reshape(bs, 1)
            w_ss += s @ s.T; w_tt += t @ t.T; w_st += s @ t.T
            count += 1
    if count != 0:
        w_ss, w_tt, w_st = w_ss / count, w_tt / count, w_st / count
    else:
        w_ss = w_tt = w_st = np.zeros((bs, bs))

    # guassian_kernel
    total = np.concatenate([feat_src, feat_tgt], axis=0)
    nm = total.shape[0]
    diff = total[None, :, :] - total[:, None, :]
    l2 = (diff ** 2).sum(-1)
    bw = float(fix_sigma) if fix_sigma else l2.sum() / (nm * nm - nm)
    bw = bw / (kernel_mul ** (kernel_num // 2))
    kernels = sum(np.exp(-l2 / (bw * (kernel_mul ** k))) for k in range(kernel_num))
    if np.isnan(kernels).any():
        return 0.0
    SS = kernels[:bs, :bs]; TT = kernels[bs:, bs:]; ST = kernels[:bs, bs:]
    loss = np.sum(w_ss * SS + w_tt * TT - 2.0 * w_st * ST)
    lamb = 2.0 / (1.0 + np.exp(-gamma * curr_iter / max_iter)) - 1.0
    return loss * lamb


if __name__ == "__main__":
    key = jax.random.PRNGKey(0)
    k1, k2, k3, k4 = jax.random.split(key, 4)

    bs, feat_dim, num_class = 8, 32, 4
    feat_src = jax.random.normal(k1, (bs, feat_dim), dtype=jnp.float32)
    feat_tgt = jax.random.normal(k2, (bs, feat_dim), dtype=jnp.float32)
    label_src = jax.random.randint(k3, (bs,), 0, num_class)
    logits_tgt = jax.nn.softmax(
        jax.random.normal(k4, (bs, num_class), dtype=jnp.float32), axis=1)

    mod = NCMMDLoss(num_class=num_class, kernel_mul=2.0, kernel_num=5,
                    fix_sigma=None, gamma=1.0, max_iter=1000)
    mod.curr_iter = 250   # nonzero so the lamb schedule does not zero the loss

    loss = mod(feat_src, feat_tgt, label_src, logits_tgt)
    loss = jax.block_until_ready(loss)

    ref = _reference_ncmmd(np.asarray(feat_src), np.asarray(feat_tgt),
                           np.asarray(label_src), np.asarray(logits_tgt),
                           num_class=num_class, kernel_mul=2.0, kernel_num=5,
                           fix_sigma=None, gamma=1.0, curr_iter=250,
                           max_iter=1000)

    np.testing.assert_allclose(float(loss), float(ref), rtol=2e-3, atol=2e-5)
    print("KERNEL_OK")
</pallas_src>

<mosaic_0001>
module attributes {stable_mosaic.version = 11 : i64} {
  func.func @_ncmmd_kernel(%arg0: i32, %arg1: memref<128x128xf32, #tpu.memory_space<vmem>>, %arg2: memref<128x128xf32, #tpu.memory_space<vmem>>, %arg3: memref<128x1xf32, #tpu.memory_space<vmem>>, %arg4: memref<1x128xf32, #tpu.memory_space<vmem>>, %arg5: memref<128x8xf32, #tpu.memory_space<vmem>>, %arg6: memref<8x128xf32, #tpu.memory_space<vmem>>, %arg7: memref<128x1xf32, #tpu.memory_space<vmem>>) attributes {dimension_semantics = [#tpu.dimension_semantics<parallel>], iteration_bounds = array<i64: 1>, scalar_prefetch = 0 : i64, scratch_operands = 0 : i64, tpu.core_type = #tpu.core_type<tc>, window_params = [{transform_indices = @transform_0, window_bounds = array<i64: 128, 128>}, {pipeline_mode = #tpu.pipeline_mode<synchronous>, transform_indices = @transform_1, window_bounds = array<i64: 128, 128>}, {transform_indices = @transform_2, window_bounds = array<i64: 128, 1>}, {pipeline_mode = #tpu.pipeline_mode<synchronous>, transform_indices = @transform_3, window_bounds = array<i64: 1, 128>}, {transform_indices = @transform_4, window_bounds = array<i64: 128, 8>}, {pipeline_mode = #tpu.pipeline_mode<synchronous>, transform_indices = @transform_5, window_bounds = array<i64: 8, 128>}, {transform_indices = @transform_6, window_bounds = array<i64: 128, 1>}]} {
    %c0 = arith.constant 0 : index
    %c0_0 = arith.constant 0 : index
    %0 = vector.load %arg1[%c0, %c0_0] : memref<128x128xf32, #tpu.memory_space<vmem>>, vector<128x128xf32>
    %c0_1 = arith.constant 0 : index
    %c0_2 = arith.constant 0 : index
    %1 = vector.load %arg2[%c0_1, %c0_2] : memref<128x128xf32, #tpu.memory_space<vmem>>, vector<128x128xf32>
    %cst = arith.constant dense<0.000000e+00> : vector<128x128xf32>
    %2 = tpu.matmul %0, %1, %cst {dimension_numbers = #tpu.dot_dimension_numbers<[1], [0], [0], [1], [0, 0, 1, 1], [], []>} : vector<128x128xf32>, vector<128x128xf32>, vector<128x128xf32> -> vector<128x128xf32>
    %c0_3 = arith.constant 0 : index
    %c0_4 = arith.constant 0 : index
    %3 = vector.load %arg3[%c0_3, %c0_4] : memref<128x1xf32, #tpu.memory_space<vmem>>, vector<128x1xf32>
    %c0_5 = arith.constant 0 : index
    %c0_6 = arith.constant 0 : index
    %4 = vector.load %arg4[%c0_5, %c0_6] : memref<1x128xf32, #tpu.memory_space<vmem>>, vector<1x128xf32>
    %5 = vector.broadcast %3 : vector<128x1xf32> to vector<128x128xf32>
    %6 = vector.broadcast %4 : vector<1x128xf32> to vector<128x128xf32>
    %7 = arith.addf %5, %6 : vector<128x128xf32>
    %8 = arith.addf %7, %2 : vector<128x128xf32>
    %9 = math.exp %8 : vector<128x128xf32>
    %10 = arith.mulf %9, %9 : vector<128x128xf32>
    %11 = arith.addf %9, %10 : vector<128x128xf32>
    %12 = arith.mulf %10, %10 : vector<128x128xf32>
    %13 = arith.addf %11, %12 : vector<128x128xf32>
    %14 = arith.mulf %12, %12 : vector<128x128xf32>
    %15 = arith.addf %13, %14 : vector<128x128xf32>
    %16 = arith.mulf %14, %14 : vector<128x128xf32>
    %17 = arith.addf %15, %16 : vector<128x128xf32>
    %c0_7 = arith.constant 0 : index
    %c0_8 = arith.constant 0 : index
    %18 = vector.load %arg5[%c0_7, %c0_8] : memref<128x8xf32, #tpu.memory_space<vmem>>, vector<128x8xf32>
    %c0_9 = arith.constant 0 : index
    %c0_10 = arith.constant 0 : index
    %19 = vector.load %arg6[%c0_9, %c0_10] : memref<8x128xf32, #tpu.memory_space<vmem>>, vector<8x128xf32>
    %cst_11 = arith.constant dense<0.000000e+00> : vector<128x128xf32>
    %20 = tpu.matmul %18, %19, %cst_11 {dimension_numbers = #tpu.dot_dimension_numbers<[1], [0], [0], [1], [0, 0, 1, 1], [], []>} : vector<128x8xf32>, vector<8x128xf32>, vector<128x128xf32> -> vector<128x128xf32>
    %21 = arith.mulf %20, %17 : vector<128x128xf32>
    %cst_12 = arith.constant dense<0.000000e+00> : vector<128xf32>
    %22 = vector.multi_reduction <add>, %21, %cst_12 [1] : vector<128x128xf32> to vector<128xf32>
    %23 = vector.shape_cast %22 : vector<128xf32> to vector<128x1xf32>
    %c0_13 = arith.constant 0 : index
    %c0_14 = arith.constant 0 : index
    %24 = vector.load %arg7[%c0_13, %c0_14] : memref<128x1xf32, #tpu.memory_space<vmem>>, vector<128x1xf32>
    tpu.vector_store %arg7[%c0_13, %c0_14], %23 {strides = array<i32>} : memref<128x1xf32, #tpu.memory_space<vmem>>, vector<128x1xf32>,
    return
  }
  func.func @transform_0(%arg0: i32) -> (i32, i32) {
    %c0_i32 = arith.constant 0 : i32
    %c0_i32_0 = arith.constant 0 : i32
    return %arg0, %c0_i32 : i32, i32
  }
  func.func @transform_1(%arg0: i32) -> (i32, i32) {
    %c0_i32 = arith.constant 0 : i32
    %c0_i32_0 = arith.constant 0 : i32
    %c0_i32_1 = arith.constant 0 : i32
    return %c0_i32, %c0_i32_0 : i32, i32
  }
  func.func @transform_2(%arg0: i32) -> (i32, i32) {
    %c0_i32 = arith.constant 0 : i32
    %c0_i32_0 = arith.constant 0 : i32
    return %arg0, %c0_i32 : i32, i32
  }
  func.func @transform_3(%arg0: i32) -> (i32, i32) {
    %c0_i32 = arith.constant 0 : i32
    %c0_i32_0 = arith.constant 0 : i32
    %c0_i32_1 = arith.constant 0 : i32
    return %c0_i32, %c0_i32_0 : i32, i32
  }
  func.func @transform_4(%arg0: i32) -> (i32, i32) {
    %c0_i32 = arith.constant 0 : i32
    %c0_i32_0 = arith.constant 0 : i32
    return %arg0, %c0_i32 : i32, i32
  }
  func.func @transform_5(%arg0: i32) -> (i32, i32) {
    %c0_i32 = arith.constant 0 : i32
    %c0_i32_0 = arith.constant 0 : i32
    %c0_i32_1 = arith.constant 0 : i32
    return %c0_i32, %c0_i32_0 : i32, i32
  }
  func.func @transform_6(%arg0: i32) -> (i32, i32) {
    %c0_i32 = arith.constant 0 : i32
    %c0_i32_0 = arith.constant 0 : i32
    return %arg0, %c0_i32 : i32, i32
  }
}

</mosaic_0001>

<llo_original>
// kernel: tpu_custom_call.1
$region0: #{tpu_custom_call.1}
  #allocation0 [shape = 'u32[]', space=smem, size = 0x4, offset = 0x4, fixed_abs, tag = 'smem constant byte address 0x4 - core index']
  #allocation1 [shape = 'u32[72,128]{1,0:T(1,128)}', space=vmem, size = 0x9000, scoped, tag = 'internal scratch']
  %s0 = inlined_call_operand.vmem [shape: f32[128,128], index: 0, kind: input, shape index: {}]
  %s1 = inlined_call_operand.vmem [shape: f32[128,128], index: 1, kind: input, shape index: {}]
  %s2 = inlined_call_operand.vmem [shape: f32[128,1], index: 2, kind: input, shape index: {}]
  %s3 = inlined_call_operand.vmem [shape: f32[1,128], index: 3, kind: input, shape index: {}]
  %s4 = inlined_call_operand.vmem [shape: f32[128,8], index: 4, kind: input, shape index: {}]
  %s5 = inlined_call_operand.hbm [shape: f32[8,128], index: 5, kind: input, shape index: {}]
  %s6 = inlined_call_operand.vmem [shape: f32[128,1], index: 6, kind: output, shape index: {}]
  %s7 = sld [smem:[#allocation0]]
  $region38: #{tpu_custom_call.1} parent=0
    _
  %s9 = ssub.s32 1, %s7
  %s10 = scalar_select 0, %s9, %s7
  $region1: #{tpu_custom_call.1} parent=0
    #allocation2 [shape = 'u8[4096]{0}', space=vmem, size = 0x1000, scoped, tag = 'input window, operand 5, single buffered']
    #allocation3 [shape = 's32[1]{0}', space=sflag, size = 0x4, scoped, tag = 'scoped memory for tpu_custom_call.1']
    %11 = vsyncpa [#allocation3], 0
    // Predicated region
    $region2: #{tpu_custom_call.1} parent=1 // pred_check
      _
    $region3: #{tpu_custom_call.1} parent=1 // pred_check_branch
      %13 = sbr.rel (0) target = $region5
    $region4: #{tpu_custom_call.1} parent=1 // pred_region
      _
    $region5: #{tpu_custom_call.1} parent=1 // pred_fallthru
      _
    // Predicated region
    $region6: #{tpu_custom_call.1} parent=1 // pred_check
      _
    $region7: #{tpu_custom_call.1} parent=1 // pred_check_branch
      %15 = sbr.rel (0) target = $region9
    $region8: #{tpu_custom_call.1} parent=1 // pred_region
      _
    $region9: #{tpu_custom_call.1} parent=1 // pred_fallthru
      _
    // Predicated region
    $region10: #{tpu_custom_call.1} parent=1 // pred_check
      _
    $region11: #{tpu_custom_call.1} parent=1 // pred_check_branch
      %17 = sbr.rel (0) target = $region13
    $region12: #{tpu_custom_call.1} parent=1 // pred_region
      _
    $region13: #{tpu_custom_call.1} parent=1 // pred_fallthru
      _
    // Predicated region
    $region14: #{tpu_custom_call.1} parent=1 // pred_check
      _
    $region15: #{tpu_custom_call.1} parent=1 // pred_check_branch
      %19 = sbr.rel (0) target = $region17
    $region16: #{tpu_custom_call.1} parent=1 // pred_region
      _
    $region17: #{tpu_custom_call.1} parent=1 // pred_fallthru
      _
    // Predicated region
    $region18: #{tpu_custom_call.1} parent=1 // pred_check
      _
    $region19: #{tpu_custom_call.1} parent=1 // pred_check_branch
      %21 = sbr.rel (0) target = $region21
    $region20: #{tpu_custom_call.1} parent=1 // pred_region
      _
    $region21: #{tpu_custom_call.1} parent=1 // pred_fallthru
      _
    // Predicated region
    $region22: #{tpu_custom_call.1} parent=1 // pred_check
      _
    $region23: #{tpu_custom_call.1} parent=1 // pred_check_branch
      %23 = sbr.rel (0) target = $region25
    $region24: #{tpu_custom_call.1} parent=1 // pred_region
      %25 = vsyncadd [#allocation3], 0
      %s27 = sshll.u32 %s5, 4
      %s28 = int_to_ptr.hbm [resolvable:$true] %s27
      %s29 = sshll.u32 [#allocation2], 4
      %s30 = int_to_ptr.vmem [resolvable:$true] %s29
      %32 = dma.hbm_to_vmem [thread:$0]  %s28, 128, %s30, [#allocation3]
    $region25: #{tpu_custom_call.1} parent=1 // pred_fallthru
      _
    // Predicated region
    $region26: #{tpu_custom_call.1} parent=1 // pred_check
      _
    $region27: #{tpu_custom_call.1} parent=1 // pred_check_branch
      %34 = sbr.rel (0) target = $region29
    $region28: #{tpu_custom_call.1} parent=1 // pred_region
      %36 = dma.done [#allocation3], 128
    $region29: #{tpu_custom_call.1} parent=1 // pred_fallthru
      _
    %v37 = vld [vmem:[%s0] sm:$0xff]
    %v38 = vld [vmem:[%s0 + $0x8] sm:$0xff]
    %v39 = vld [vmem:[%s0 + $0x10] sm:$0xff]
    %v40 = vld [vmem:[%s0 + $0x18] sm:$0xff]
    %v41 = vld [vmem:[%s0 + $0x20] sm:$0xff]
    %v42 = vld [vmem:[%s0 + $0x28] sm:$0xff]
    %v43 = vld [vmem:[%s0 + $0x30] sm:$0xff]
    %v44 = vld [vmem:[%s0 + $0x38] sm:$0xff]
    %v45 = vld [vmem:[%s0 + $0x40] sm:$0xff]
    %v46 = vld [vmem:[%s0 + $0x48] sm:$0xff]
    %v47 = vld [vmem:[%s0 + $0x50] sm:$0xff]
    %v48 = vld [vmem:[%s0 + $0x58] sm:$0xff]
    %v49 = vld [vmem:[%s0 + $0x60] sm:$0xff]
    %v50 = vld [vmem:[%s0 + $0x68] sm:$0xff]
    %v51 = vld [vmem:[%s0 + $0x70] sm:$0xff]
    %v52 = vld [vmem:[%s0 + $0x78] sm:$0xff]
    %v53 = vld [vmem:[%s1] sm:$0xff]
    %v54 = vld [vmem:[%s1 + $0x8] sm:$0xff]
    %v55 = vld [vmem:[%s1 + $0x10] sm:$0xff]
    %v56 = vld [vmem:[%s1 + $0x18] sm:$0xff]
    %v57 = vld [vmem:[%s1 + $0x20] sm:$0xff]
    %v58 = vld [vmem:[%s1 + $0x28] sm:$0xff]
    %v59 = vld [vmem:[%s1 + $0x30] sm:$0xff]
    %v60 = vld [vmem:[%s1 + $0x38] sm:$0xff]
    %v61 = vld [vmem:[%s1 + $0x40] sm:$0xff]
    %v62 = vld [vmem:[%s1 + $0x48] sm:$0xff]
    %v63 = vld [vmem:[%s1 + $0x50] sm:$0xff]
    %v64 = vld [vmem:[%s1 + $0x58] sm:$0xff]
    %v65 = vld [vmem:[%s1 + $0x60] sm:$0xff]
    %v66 = vld [vmem:[%s1 + $0x68] sm:$0xff]
    %v67 = vld [vmem:[%s1 + $0x70] sm:$0xff]
    %v68 = vld [vmem:[%s1 + $0x78] sm:$0xff]
    %69 = vmatpush.msra.mxu0 %v68
    %70 = vmatpush.msra.mxu0 %v67
    %71 = vmatpush.msra.mxu0 %v66
    %72 = vmatpush.msra.mxu0 %v65
    %73 = vmatpush.msra.mxu0 %v64
    %74 = vmatpush.msra.mxu0 %v63
    %75 = vmatpush.msra.mxu0 %v62
    %76 = vmatpush.msra.mxu0 %v61
    %77 = vmatpush.msra.mxu0 %v60
    %78 = vmatpush.msra.mxu0 %v59
    %79 = vmatpush.msra.mxu0 %v58
    %80 = vmatpush.msra.mxu0 %v57
    %81 = vmatpush.msra.mxu0 %v56
    %82 = vmatpush.msra.mxu0 %v55
    %83 = vmatpush.msra.mxu0 %v54
    %84 = vmatpush.msra.mxu0 %v53
    %85 = vmatmul.f32.gmra.mxu0 %v37
    %v86 = vpop.f32.mrf.mxu0
    %v87 = vadd.f32 0.0, %v86
    %88 = vmatmul.f32.gmra.mxu0 %v38
    %v89 = vpop.f32.mrf.mxu0
    %v90 = vadd.f32 0.0, %v89
    %91 = vmatmul.f32.gmra.mxu0 %v39
    %v92 = vpop.f32.mrf.mxu0
    %v93 = vadd.f32 0.0, %v92
    %94 = vmatmul.f32.gmra.mxu0 %v40
    %v95 = vpop.f32.mrf.mxu0
    %v96 = vadd.f32 0.0, %v95
    %97 = vmatmul.f32.gmra.mxu0 %v41
    %v98 = vpop.f32.mrf.mxu0
    %v99 = vadd.f32 0.0, %v98
    %100 = vmatmul.f32.gmra.mxu0 %v42
    %v101 = vpop.f32.mrf.mxu0
    %v102 = vadd.f32 0.0, %v101
    %103 = vmatmul.f32.gmra.mxu0 %v43
    %v104 = vpop.f32.mrf.mxu0
    %v105 = vadd.f32 0.0, %v104
    %106 = vmatmul.f32.gmra.mxu0 %v44
    %v107 = vpop.f32.mrf.mxu0
    %v108 = vadd.f32 0.0, %v107
    %109 = vmatmul.f32.gmra.mxu0 %v45
    %v110 = vpop.f32.mrf.mxu0
    %v111 = vadd.f32 0.0, %v110
    %112 = vmatmul.f32.gmra.mxu0 %v46
    %v113 = vpop.f32.mrf.mxu0
    %v114 = vadd.f32 0.0, %v113
    %115 = vmatmul.f32.gmra.mxu0 %v47
    %v116 = vpop.f32.mrf.mxu0
    %v117 = vadd.f32 0.0, %v116
    %118 = vmatmul.f32.gmra.mxu0 %v48
    %v119 = vpop.f32.mrf.mxu0
    %v120 = vadd.f32 0.0, %v119
    %121 = vmatmul.f32.gmra.mxu0 %v49
    %v122 = vpop.f32.mrf.mxu0
    %v123 = vadd.f32 0.0, %v122
    %124 = vmatmul.f32.gmra.mxu0 %v50
    %v125 = vpop.f32.mrf.mxu0
    %v126 = vadd.f32 0.0, %v125
    %127 = vmatmul.f32.gmra.mxu0 %v51
    %v128 = vpop.f32.mrf.mxu0
    %v129 = vadd.f32 0.0, %v128
    %130 = vmatmul.f32.gmra.mxu0 %v52
    %v131 = vpop.f32.mrf.mxu0
    %v132 = vadd.f32 0.0, %v131
    %133 = vdwg.mxu0
    %v134 = vld [vmem:[%s2] sm:$0xff]
    %v135 = vld [vmem:[%s2 + $0x8] sm:$0xff]
    %v136 = vld [vmem:[%s2 + $0x10] sm:$0xff]
    %v137 = vld [vmem:[%s2 + $0x18] sm:$0xff]
    %v138 = vld [vmem:[%s2 + $0x20] sm:$0xff]
    %v139 = vld [vmem:[%s2 + $0x28] sm:$0xff]
    %v140 = vld [vmem:[%s2 + $0x30] sm:$0xff]
    %v141 = vld [vmem:[%s2 + $0x38] sm:$0xff]
    %v142 = vld [vmem:[%s2 + $0x40] sm:$0xff]
    %v143 = vld [vmem:[%s2 + $0x48] sm:$0xff]
    %v144 = vld [vmem:[%s2 + $0x50] sm:$0xff]
    %v145 = vld [vmem:[%s2 + $0x58] sm:$0xff]
    %v146 = vld [vmem:[%s2 + $0x60] sm:$0xff]
    %v147 = vld [vmem:[%s2 + $0x68] sm:$0xff]
    %v148 = vld [vmem:[%s2 + $0x70] sm:$0xff]
    %v149 = vld [vmem:[%s2 + $0x78] sm:$0xff]
    %v150 = vld [vmem:[%s3] sm:$0x1]
    %152 = vset.pattern.permute.xlu0 0
    %153 = vperm.xlu0 %152, %v134
    %v154 = vpop.permute.xlu0 %153
    %157 = vset.pattern.permute.xlu0 0
    %158 = vperm.xlu0 %157, %v135
    %v159 = vpop.permute.xlu0 %158
    %162 = vset.pattern.permute.xlu0 0
    %163 = vperm.xlu0 %162, %v136
    %v164 = vpop.permute.xlu0 %163
    %167 = vset.pattern.permute.xlu0 0
    %168 = vperm.xlu0 %167, %v137
    %v169 = vpop.permute.xlu0 %168
    %172 = vset.pattern.permute.xlu0 0
    %173 = vperm.xlu0 %172, %v138
    %v174 = vpop.permute.xlu0 %173
    %177 = vset.pattern.permute.xlu0 0
    %178 = vperm.xlu0 %177, %v139
    %v179 = vpop.permute.xlu0 %178
    %182 = vset.pattern.permute.xlu0 0
    %183 = vperm.xlu0 %182, %v140
    %v184 = vpop.permute.xlu0 %183
    %187 = vset.pattern.permute.xlu0 0
    %188 = vperm.xlu0 %187, %v141
    %v189 = vpop.permute.xlu0 %188
    %192 = vset.pattern.permute.xlu0 0
    %193 = vperm.xlu0 %192, %v142
    %v194 = vpop.permute.xlu0 %193
    %197 = vset.pattern.permute.xlu0 0
    %198 = vperm.xlu0 %197, %v143
    %v199 = vpop.permute.xlu0 %198
    %202 = vset.pattern.permute.xlu0 0
    %203 = vperm.xlu0 %202, %v144
    %v204 = vpop.permute.xlu0 %203
    %207 = vset.pattern.permute.xlu0 0
    %208 = vperm.xlu0 %207, %v145
    %v209 = vpop.permute.xlu0 %208
    %212 = vset.pattern.permute.xlu0 0
    %213 = vperm.xlu0 %212, %v146
    %v214 = vpop.permute.xlu0 %213
    %217 = vset.pattern.permute.xlu0 0
    %218 = vperm.xlu0 %217, %v147
    %v219 = vpop.permute.xlu0 %218
    %222 = vset.pattern.permute.xlu0 0
    %223 = vperm.xlu0 %222, %v148
    %v224 = vpop.permute.xlu0 %223
    %227 = vset.pattern.permute.xlu0 0
    %228 = vperm.xlu0 %227, %v149
    %v229 = vpop.permute.xlu0 %228
    %v232 = vperm.slane %v150, 0
    %v234 = vadd.f32 %v154, %v232
    %v235 = vadd.f32 %v159, %v232
    %v236 = vadd.f32 %v164, %v232
    %v237 = vadd.f32 %v169, %v232
    %v238 = vadd.f32 %v174, %v232
    %v239 = vadd.f32 %v179, %v232
    %v240 = vadd.f32 %v184, %v232
    %v241 = vadd.f32 %v189, %v232
    %v242 = vadd.f32 %v194, %v232
    %v243 = vadd.f32 %v199, %v232
    %v244 = vadd.f32 %v204, %v232
    %v245 = vadd.f32 %v209, %v232
    %v246 = vadd.f32 %v214, %v232
    %v247 = vadd.f32 %v219, %v232
    %v248 = vadd.f32 %v224, %v232
    %v249 = vadd.f32 %v229, %v232
    %v250 = vadd.f32 %v234, %v87
    %v251 = vadd.f32 %v235, %v90
    %v252 = vadd.f32 %v236, %v93
    %v253 = vadd.f32 %v237, %v96
    %v254 = vadd.f32 %v238, %v99
    %v255 = vadd.f32 %v239, %v102
    %v256 = vadd.f32 %v240, %v105
    %v257 = vadd.f32 %v241, %v108
    %v258 = vadd.f32 %v242, %v111
    %v259 = vadd.f32 %v243, %v114
    %v260 = vadd.f32 %v244, %v117
    %v261 = vadd.f32 %v245, %v120
    %v262 = vadd.f32 %v246, %v123
    %v263 = vadd.f32 %v247, %v126
    %v264 = vadd.f32 %v248, %v129
    %v265 = vadd.f32 %v249, %v132
    %v266 = vmul.f32 %v250, 1.442695
    %v267 = vpow.pop %v266
    %v268 = vmul.f32 %v251, 1.442695
    %v269 = vpow.pop %v268
    %v270 = vmul.f32 %v252, 1.442695
    %v271 = vpow.pop %v270
    %v272 = vmul.f32 %v253, 1.442695
    %v273 = vpow.pop %v272
    %v274 = vmul.f32 %v254, 1.442695
    %v275 = vpow.pop %v274
    %v276 = vmul.f32 %v255, 1.442695
    %v277 = vpow.pop %v276
    %v278 = vmul.f32 %v256, 1.442695
    %v279 = vpow.pop %v278
    %v280 = vmul.f32 %v257, 1.442695
    %v281 = vpow.pop %v280
    %v282 = vmul.f32 %v258, 1.442695
    %v283 = vpow.pop %v282
    %v284 = vmul.f32 %v259, 1.442695
    %v285 = vpow.pop %v284
    %v286 = vmul.f32 %v260, 1.442695
    %v287 = vpow.pop %v286
    %v288 = vmul.f32 %v261, 1.442695
    %v289 = vpow.pop %v288
    %v290 = vmul.f32 %v262, 1.442695
    %v291 = vpow.pop %v290
    %v292 = vmul.f32 %v263, 1.442695
    %v293 = vpow.pop %v292
    %v294 = vmul.f32 %v264, 1.442695
    %v295 = vpow.pop %v294
    %v296 = vmul.f32 %v265, 1.442695
    %v297 = vpow.pop %v296
    %v298 = vmul.f32 %v267, %v267
    %v299 = vmul.f32 %v269, %v269
    %v300 = vmul.f32 %v271, %v271
    %v301 = vmul.f32 %v273, %v273
    %v302 = vmul.f32 %v275, %v275
    %v303 = vmul.f32 %v277, %v277
    %v304 = vmul.f32 %v279, %v279
    %v305 = vmul.f32 %v281, %v281
    %v306 = vmul.f32 %v283, %v283
    %v307 = vmul.f32 %v285, %v285
    %v308 = vmul.f32 %v287, %v287
    %v309 = vmul.f32 %v289, %v289
    %v310 = vmul.f32 %v291, %v291
    %v311 = vmul.f32 %v293, %v293
    %v312 = vmul.f32 %v295, %v295
    %v313 = vmul.f32 %v297, %v297
    %v314 = vadd.f32 %v267, %v298
    %v315 = vadd.f32 %v269, %v299
    %v316 = vadd.f32 %v271, %v300
    %v317 = vadd.f32 %v273, %v301
    %v318 = vadd.f32 %v275, %v302
    %v319 = vadd.f32 %v277, %v303
    %v320 = vadd.f32 %v279, %v304
    %v321 = vadd.f32 %v281, %v305
    %v322 = vadd.f32 %v283, %v306
    %v323 = vadd.f32 %v285, %v307
    %v324 = vadd.f32 %v287, %v308
    %v325 = vadd.f32 %v289, %v309
    %v326 = vadd.f32 %v291, %v310
    %v327 = vadd.f32 %v293, %v311
    %v328 = vadd.f32 %v295, %v312
    %v329 = vadd.f32 %v297, %v313
    %v330 = vmul.f32 %v298, %v298
    %v331 = vmul.f32 %v299, %v299
    %v332 = vmul.f32 %v300, %v300
    %v333 = vmul.f32 %v301, %v301
    %v334 = vmul.f32 %v302, %v302
    %v335 = vmul.f32 %v303, %v303
    %v336 = vmul.f32 %v304, %v304
    %v337 = vmul.f32 %v305, %v305
    %v338 = vmul.f32 %v306, %v306
    %v339 = vmul.f32 %v307, %v307
    %v340 = vmul.f32 %v308, %v308
    %v341 = vmul.f32 %v309, %v309
    %v342 = vmul.f32 %v310, %v310
    %v343 = vmul.f32 %v311, %v311
    %v344 = vmul.f32 %v312, %v312
    %v345 = vmul.f32 %v313, %v313
    %v346 = vadd.f32 %v314, %v330
    %v347 = vadd.f32 %v315, %v331
    %v348 = vadd.f32 %v316, %v332
    %v349 = vadd.f32 %v317, %v333
    %v350 = vadd.f32 %v318, %v334
    %v351 = vadd.f32 %v319, %v335
    %v352 = vadd.f32 %v320, %v336
    %v353 = vadd.f32 %v321, %v337
    %v354 = vadd.f32 %v322, %v338
    %v355 = vadd.f32 %v323, %v339
    %v356 = vadd.f32 %v324, %v340
    %v357 = vadd.f32 %v325, %v341
    %v358 = vadd.f32 %v326, %v342
    %v359 = vadd.f32 %v327, %v343
    %v360 = vadd.f32 %v328, %v344
    %v361 = vadd.f32 %v329, %v345
    %v362 = vmul.f32 %v330, %v330
    %v363 = vmul.f32 %v331, %v331
    %v364 = vmul.f32 %v332, %v332
    %v365 = vmul.f32 %v333, %v333
    %v366 = vmul.f32 %v334, %v334
    %v367 = vmul.f32 %v335, %v335
    %v368 = vmul.f32 %v336, %v336
    %v369 = vmul.f32 %v337, %v337
    %v370 = vmul.f32 %v338, %v338
    %v371 = vmul.f32 %v339, %v339
    %v372 = vmul.f32 %v340, %v340
    %v373 = vmul.f32 %v341, %v341
    %v374 = vmul.f32 %v342, %v342
    %v375 = vmul.f32 %v343, %v343
    %v376 = vmul.f32 %v344, %v344
    %v377 = vmul.f32 %v345, %v345
    %v378 = vadd.f32 %v346, %v362
    %v379 = vadd.f32 %v347, %v363
    %v380 = vadd.f32 %v348, %v364
    %v381 = vadd.f32 %v349, %v365
    %v382 = vadd.f32 %v350, %v366
    %v383 = vadd.f32 %v351, %v367
    %v384 = vadd.f32 %v352, %v368
    %v385 = vadd.f32 %v353, %v369
    %v386 = vadd.f32 %v354, %v370
    %v387 = vadd.f32 %v355, %v371
    %v388 = vadd.f32 %v356, %v372
    %v389 = vadd.f32 %v357, %v373
    %v390 = vadd.f32 %v358, %v374
    %v391 = vadd.f32 %v359, %v375
    %v392 = vadd.f32 %v360, %v376
    %v393 = vadd.f32 %v361, %v377
    %v394 = vmul.f32 %v362, %v362
    %v395 = vmul.f32 %v363, %v363
    %v396 = vmul.f32 %v364, %v364
    %v397 = vmul.f32 %v365, %v365
    %v398 = vmul.f32 %v366, %v366
    %v399 = vmul.f32 %v367, %v367
    %v400 = vmul.f32 %v368, %v368
    %v401 = vmul.f32 %v369, %v369
    %v402 = vmul.f32 %v370, %v370
    %v403 = vmul.f32 %v371, %v371
    %v404 = vmul.f32 %v372, %v372
    %v405 = vmul.f32 %v373, %v373
    %v406 = vmul.f32 %v374, %v374
    %v407 = vmul.f32 %v375, %v375
    %v408 = vmul.f32 %v376, %v376
    %v409 = vmul.f32 %v377, %v377
    %v410 = vadd.f32 %v378, %v394
    %v411 = vadd.f32 %v379, %v395
    %v412 = vadd.f32 %v380, %v396
    %v413 = vadd.f32 %v381, %v397
    %v414 = vadd.f32 %v382, %v398
    %v415 = vadd.f32 %v383, %v399
    %v416 = vadd.f32 %v384, %v400
    %v417 = vadd.f32 %v385, %v401
    %v418 = vadd.f32 %v386, %v402
    %v419 = vadd.f32 %v387, %v403
    %v420 = vadd.f32 %v388, %v404
    %v421 = vadd.f32 %v389, %v405
    %v422 = vadd.f32 %v390, %v406
    %v423 = vadd.f32 %v391, %v407
    %v424 = vadd.f32 %v392, %v408
    %v425 = vadd.f32 %v393, %v409
    %v426 = vld [vmem:[%s4] sm:$0xff]
    %v427 = vld [vmem:[%s4 + $0x8] sm:$0xff]
    %v428 = vld [vmem:[%s4 + $0x10] sm:$0xff]
    %v429 = vld [vmem:[%s4 + $0x18] sm:$0xff]
    %v430 = vld [vmem:[%s4 + $0x20] sm:$0xff]
    %v431 = vld [vmem:[%s4 + $0x28] sm:$0xff]
    %v432 = vld [vmem:[%s4 + $0x30] sm:$0xff]
    %v433 = vld [vmem:[%s4 + $0x38] sm:$0xff]
    %v434 = vld [vmem:[%s4 + $0x40] sm:$0xff]
    %v435 = vld [vmem:[%s4 + $0x48] sm:$0xff]
    %v436 = vld [vmem:[%s4 + $0x50] sm:$0xff]
    %v437 = vld [vmem:[%s4 + $0x58] sm:$0xff]
    %v438 = vld [vmem:[%s4 + $0x60] sm:$0xff]
    %v439 = vld [vmem:[%s4 + $0x68] sm:$0xff]
    %v440 = vld [vmem:[%s4 + $0x70] sm:$0xff]
    %v441 = vld [vmem:[%s4 + $0x78] sm:$0xff]
    %v442 = vld [vmem:[#allocation2] sm:$0xff]
    %vm443 = vcmask 64512
    %v445 = vsel %vm443, %v426, 0
    %v448 = vsel %vm443, %v427, 0
    %v451 = vsel %vm443, %v428, 0
    %v454 = vsel %vm443, %v429, 0
    %v457 = vsel %vm443, %v430, 0
    %v460 = vsel %vm443, %v431, 0
    %v463 = vsel %vm443, %v432, 0
    %v466 = vsel %vm443, %v433, 0
    %v469 = vsel %vm443, %v434, 0
    %v472 = vsel %vm443, %v435, 0
    %v475 = vsel %vm443, %v436, 0
    %v478 = vsel %vm443, %v437, 0
    %v481 = vsel %vm443, %v438, 0
    %v484 = vsel %vm443, %v439, 0
    %v487 = vsel %vm443, %v440, 0
    %v490 = vsel %vm443, %v441, 0
    %492 = vmatpush.msra.mxu0 0.0
    %493 = vmatpush.msra.mxu0 0.0
    %494 = vmatpush.msra.mxu0 0.0
    %495 = vmatpush.msra.mxu0 0.0
    %496 = vmatpush.msra.mxu0 0.0
    %497 = vmatpush.msra.mxu0 0.0
    %498 = vmatpush.msra.mxu0 0.0
    %499 = vmatpush.msra.mxu0 0.0
    %500 = vmatpush.msra.mxu0 0.0
    %501 = vmatpush.msra.mxu0 0.0
    %502 = vmatpush.msra.mxu0 0.0
    %503 = vmatpush.msra.mxu0 0.0
    %504 = vmatpush.msra.mxu0 0.0
    %505 = vmatpush.msra.mxu0 0.0
    %506 = vmatpush.msra.mxu0 0.0
    %507 = vmatpush.msra.mxu0 %v442
    %508 = vmatmul.f32.gmra.mxu0 %v445
    %v509 = vpop.f32.mrf.mxu0
    %v510 = vadd.f32 0.0, %v509
    %511 = vmatmul.f32.gmra.mxu0 %v448
    %v512 = vpop.f32.mrf.mxu0
    %v513 = vadd.f32 0.0, %v512
    %514 = vmatmul.f32.gmra.mxu0 %v451
    %v515 = vpop.f32.mrf.mxu0
    %v516 = vadd.f32 0.0, %v515
    %517 = vmatmul.f32.gmra.mxu0 %v454
    %v518 = vpop.f32.mrf.mxu0
    %v519 = vadd.f32 0.0, %v518
    %520 = vmatmul.f32.gmra.mxu0 %v457
    %v521 = vpop.f32.mrf.mxu0
    %v522 = vadd.f32 0.0, %v521
    %523 = vmatmul.f32.gmra.mxu0 %v460
    %v524 = vpop.f32.mrf.mxu0
    %v525 = vadd.f32 0.0, %v524
    %526 = vmatmul.f32.gmra.mxu0 %v463
    %v527 = vpop.f32.mrf.mxu0
    %v528 = vadd.f32 0.0, %v527
    %529 = vmatmul.f32.gmra.mxu0 %v466
    %v530 = vpop.f32.mrf.mxu0
    %v531 = vadd.f32 0.0, %v530
    %532 = vmatmul.f32.gmra.mxu0 %v469
    %v533 = vpop.f32.mrf.mxu0
    %v534 = vadd.f32 0.0, %v533
    %535 = vmatmul.f32.gmra.mxu0 %v472
    %v536 = vpop.f32.mrf.mxu0
    %v537 = vadd.f32 0.0, %v536
    %538 = vmatmul.f32.gmra.mxu0 %v475
    %v539 = vpop.f32.mrf.mxu0
    %v540 = vadd.f32 0.0, %v539
    %541 = vmatmul.f32.gmra.mxu0 %v478
    %v542 = vpop.f32.mrf.mxu0
    %v543 = vadd.f32 0.0, %v542
    %544 = vmatmul.f32.gmra.mxu0 %v481
    %v545 = vpop.f32.mrf.mxu0
    %v546 = vadd.f32 0.0, %v545
    %547 = vmatmul.f32.gmra.mxu0 %v484
    %v548 = vpop.f32.mrf.mxu0
    %v549 = vadd.f32 0.0, %v548
    %550 = vmatmul.f32.gmra.mxu0 %v487
    %v551 = vpop.f32.mrf.mxu0
    %v552 = vadd.f32 0.0, %v551
    %553 = vmatmul.f32.gmra.mxu0 %v490
    %v554 = vpop.f32.mrf.mxu0
    %v555 = vadd.f32 0.0, %v554
    %556 = vdwg.mxu0
    %v557 = vmul.f32 %v510, %v410
    %v558 = vmul.f32 %v513, %v411
    %v559 = vmul.f32 %v516, %v412
    %v560 = vmul.f32 %v519, %v413
    %v561 = vmul.f32 %v522, %v414
    %v562 = vmul.f32 %v525, %v415
    %v563 = vmul.f32 %v528, %v416
    %v564 = vmul.f32 %v531, %v417
    %v565 = vmul.f32 %v534, %v418
    %v566 = vmul.f32 %v537, %v419
    %v567 = vmul.f32 %v540, %v420
    %v568 = vmul.f32 %v543, %v421
    %v569 = vmul.f32 %v546, %v422
    %v570 = vmul.f32 %v549, %v423
    %v571 = vmul.f32 %v552, %v424
    %v572 = vmul.f32 %v555, %v425
    %573 = vadd.xlane.f32.xlu0 %v557
    %v574 = vpop.xlane.xlu0 %573
    %575 = vadd.xlane.f32.xlu0 %v558
    %v576 = vpop.xlane.xlu0 %575
    %577 = vadd.xlane.f32.xlu0 %v559
    %v578 = vpop.xlane.xlu0 %577
    %579 = vadd.xlane.f32.xlu0 %v560
    %v580 = vpop.xlane.xlu0 %579
    %581 = vadd.xlane.f32.xlu0 %v561
    %v582 = vpop.xlane.xlu0 %581
    %583 = vadd.xlane.f32.xlu0 %v562
    %v584 = vpop.xlane.xlu0 %583
    %585 = vadd.xlane.f32.xlu0 %v563
    %v586 = vpop.xlane.xlu0 %585
    %587 = vadd.xlane.f32.xlu0 %v564
    %v588 = vpop.xlane.xlu0 %587
    %589 = vadd.xlane.f32.xlu0 %v565
    %v590 = vpop.xlane.xlu0 %589
    %591 = vadd.xlane.f32.xlu0 %v566
    %v592 = vpop.xlane.xlu0 %591
    %593 = vadd.xlane.f32.xlu0 %v567
    %v594 = vpop.xlane.xlu0 %593
    %595 = vadd.xlane.f32.xlu0 %v568
    %v596 = vpop.xlane.xlu0 %595
    %597 = vadd.xlane.f32.xlu0 %v569
    %v598 = vpop.xlane.xlu0 %597
    %599 = vadd.xlane.f32.xlu0 %v570
    %v600 = vpop.xlane.xlu0 %599
    %601 = vadd.xlane.f32.xlu0 %v571
    %v602 = vpop.xlane.xlu0 %601
    %603 = vadd.xlane.f32.xlu0 %v572
    %v604 = vpop.xlane.xlu0 %603
    %vm605 = vcmask 7168
    %606 = vst.msk [vmem:[%s6] sm:$0xff] %vm605, %v574
    %607 = vst.msk [vmem:[%s6 + $0x8] sm:$0xff] %vm605, %v576
    %608 = vst.msk [vmem:[%s6 + $0x10] sm:$0xff] %vm605, %v578
    %609 = vst.msk [vmem:[%s6 + $0x18] sm:$0xff] %vm605, %v580
    %610 = vst.msk [vmem:[%s6 + $0x20] sm:$0xff] %vm605, %v582
    %611 = vst.msk [vmem:[%s6 + $0x28] sm:$0xff] %vm605, %v584
    %612 = vst.msk [vmem:[%s6 + $0x30] sm:$0xff] %vm605, %v586
    %613 = vst.msk [vmem:[%s6 + $0x38] sm:$0xff] %vm605, %v588
    %614 = vst.msk [vmem:[%s6 + $0x40] sm:$0xff] %vm605, %v590
    %615 = vst.msk [vmem:[%s6 + $0x48] sm:$0xff] %vm605, %v592
    %616 = vst.msk [vmem:[%s6 + $0x50] sm:$0xff] %vm605, %v594
    %617 = vst.msk [vmem:[%s6 + $0x58] sm:$0xff] %vm605, %v596
    %618 = vst.msk [vmem:[%s6 + $0x60] sm:$0xff] %vm605, %v598
    %619 = vst.msk [vmem:[%s6 + $0x68] sm:$0xff] %vm605, %v600
    %620 = vst.msk [vmem:[%s6 + $0x70] sm:$0xff] %vm605, %v602
    %621 = vst.msk [vmem:[%s6 + $0x78] sm:$0xff] %vm605, %v604
    // Predicated region
    $region30: #{tpu_custom_call.1} parent=1 // pred_check
      _
    $region31: #{tpu_custom_call.1} parent=1 // pred_check_branch
      %623 = sbr.rel (0) target = $region33
    $region32: #{tpu_custom_call.1} parent=1 // pred_region
      _
    $region33: #{tpu_custom_call.1} parent=1 // pred_fallthru
      _
    // Predicated region
    $region34: #{tpu_custom_call.1} parent=1 // pred_check
      _
    $region35: #{tpu_custom_call.1} parent=1 // pred_check_branch
      %625 = sbr.rel (0) target = $region37
    $region36: #{tpu_custom_call.1} parent=1 // pred_region
      _
    $region37: #{tpu_custom_call.1} parent=1 // pred_fallthru
      _
    %626 = vsyncpa [#allocation3], 1

</llo_original>
